<compile_context>
chip_gen: v6e
topology: v6e:2x2x1
jax: 0.10.0
libtpu: 0.0.40
codegen_flags: <defaults>
</compile_context>

<pallas_src>
import functools
import math

import jax
import jax.numpy as jnp
from jax.experimental import pallas as pl
from jax.experimental.pallas import tpu as pltpu

_LANE = 128
_TARGET_TILE_BYTES = 2 * 1024 * 1024


# ----------------------------------------------------------------------------
# Pallas LayerNorm2d kernels (normalize over channel axis of an NCHW tensor)
# ----------------------------------------------------------------------------
def _ln_spatial_kernel(x_ref, w_ref, b_ref, o_ref, *, eps, inv_c):
    """Main layout: x_ref (C, ts, 128) -- spatial on (sublane, lane).

    Channel reduction is C-1 VPU adds; weight/bias are per-channel SMEM scalars.
    """
    cdim = x_ref.shape[0]
    x = x_ref[...].astype(jnp.float32)                      # (C, ts, 128)
    s = x[0]
    for c in range(1, cdim):
        s = s + x[c]
    mean = s * inv_c                                        # (ts, 128)
    xc = [x[c] - mean for c in range(cdim)]
    v = xc[0] * xc[0]
    for c in range(1, cdim):
        v = v + xc[c] * xc[c]
    inv = jax.lax.rsqrt(v * inv_c + eps)                    # biased var (torch)
    for c in range(cdim):
        o_ref[c] = (xc[c] * inv * w_ref[c] + b_ref[c]).astype(o_ref.dtype)


def _res_ln_spatial_kernel(inp_ref, dx_ref, w_ref, b_ref, beta_ref,
                           y_ref, o_ref, *, eps, inv_c):
    """Fused: y = inp + dx*beta (per-channel) followed by LayerNorm2d(y).

    Emits both y and LN(y); removes one full HBM round-trip of the activation.
    """
    cdim = inp_ref.shape[0]
    ych = []
    for c in range(cdim):
        yc = inp_ref[c].astype(jnp.float32) + dx_ref[c].astype(jnp.float32) * beta_ref[c]
        y_ref[c] = yc.astype(y_ref.dtype)
        ych.append(yc)
    s = ych[0]
    for c in range(1, cdim):
        s = s + ych[c]
    mean = s * inv_c
    cen = [ych[c] - mean for c in range(cdim)]
    v = cen[0] * cen[0]
    for c in range(1, cdim):
        v = v + cen[c] * cen[c]
    inv = jax.lax.rsqrt(v * inv_c + eps)
    for c in range(cdim):
        o_ref[c] = (cen[c] * inv * w_ref[c] + b_ref[c]).astype(o_ref.dtype)


def _ln_lane_kernel(x_ref, w_ref, b_ref, o_ref, *, eps, inv_c):
    """Fallback layout (HW % 128 != 0): x_ref (C, tn), channels on sublanes."""
    x = x_ref[...].astype(jnp.float32)                      # (C, tn)
    mean = jnp.sum(x, axis=0, keepdims=True) * inv_c
    xc = x - mean
    var = jnp.sum(xc * xc, axis=0, keepdims=True) * inv_c
    inv = jax.lax.rsqrt(var + eps)
    o_ref[...] = (xc * inv * w_ref[...] + b_ref[...]).astype(o_ref.dtype)


# ----------------------------------------------------------------------------
# Tile sizing / VMEM budgeting helpers
# ----------------------------------------------------------------------------
def _choose_sub_tile(n_sub, c, itemsize, target_bytes=_TARGET_TILE_BYTES):
    """Sublane-tile (multiple of 8 or full extent) for the (C, ts, 128) layout."""
    row_bytes = max(1, c * _LANE * itemsize)
    ts = max(8, (target_bytes // row_bytes) // 8 * 8)
    half = (n_sub // 2) // 8 * 8          # guarantee >=2 grid steps when possible
    if half >= 8:
        ts = min(ts, half)
    if ts >= n_sub:
        return n_sub
    return ts


def _choose_lane_tile(hw, c, itemsize, target_bytes=_TARGET_TILE_BYTES):
    """Lane-tile (multiple of 128 or full extent) for the fallback (C, tn) layout.

    Sizing accounts for physical sublane padding of the channel axis.
    """
    sub_tile = 32 // itemsize             # 8 f32 / 16 bf16 / 32 int8 sublanes
    c_pad = ((c + sub_tile - 1) // sub_tile) * sub_tile
    row_bytes = max(1, c_pad * itemsize)
    tn = max(_LANE, (target_bytes // row_bytes) // _LANE * _LANE)
    half = (hw // 2) // _LANE * _LANE     # >=2 grid steps when possible
    if half >= _LANE:
        tn = min(tn, half)
    if tn >= hw:
        return hw
    return tn


def _vmem_limit_bytes(tile_bytes, n_io):
    """Double-buffered footprint of all tiled I/O arrays + headroom, clamped."""
    est = 2 * n_io * tile_bytes + (2 << 20)
    return int(min(max(est, 8 << 20), 56 << 20))


# ----------------------------------------------------------------------------
# Wrappers
# ----------------------------------------------------------------------------
def layernorm2d_pallas(x, weight, bias, eps=1e-6):
    """LayerNorm over dim=1 of an NCHW tensor (matches LayerNorm2d.forward)."""
    B, C, H, W = x.shape
    HW = H * W
    itemsize = jnp.dtype(x.dtype).itemsize
    inv_c = 1.0 / C
    n_elems = B * C * HW
    w1 = weight.reshape(C).astype(jnp.float32)
    b1 = bias.reshape(C).astype(jnp.float32)
    cost = pl.CostEstimate(flops=8 * n_elems, transcendentals=B * HW,
                           bytes_accessed=2 * n_elems * itemsize)

    if HW % _LANE == 0:
        # -------- main path: spatial on (sublane, lane), channel on 3rd-minor --------
        n_sub = HW // _LANE
        ts = _choose_sub_tile(n_sub, C, itemsize)
        n_tiles = pl.cdiv(n_sub, ts)
        x4 = x.reshape(B, C, n_sub, _LANE)                  # free reshape
        tile_bytes = C * ts * _LANE * itemsize
        spec = pl.BlockSpec((None, C, ts, _LANE), lambda j, b: (b, 0, j, 0))
        smem = pl.BlockSpec(memory_space=pltpu.MemorySpace.SMEM)
        out = pl.pallas_call(
            functools.partial(_ln_spatial_kernel, eps=float(eps), inv_c=inv_c),
            out_shape=jax.ShapeDtypeStruct((B, C, n_sub, _LANE), x.dtype),
            grid_spec=pltpu.PrefetchScalarGridSpec(
                num_scalar_prefetch=0,
                grid=(n_tiles, B),                          # tiles-major: balances 2 TCs
                in_specs=[spec, smem, smem],
                out_specs=spec,
            ),
            compiler_params=pltpu.CompilerParams(
                dimension_semantics=("parallel", "parallel"),
                vmem_limit_bytes=_vmem_limit_bytes(tile_bytes, 2),
            ),
            cost_estimate=cost,
        )(x4, w1, b1)
        return out.reshape(B, C, H, W)

    # -------- fallback path: HW not a multiple of 128, lane-dense (C, tn) tiles --------
    x3 = x.reshape(B, C, HW)
    tn = _choose_lane_tile(HW, C, itemsize)
    n_tiles = pl.cdiv(HW, tn)
    sub_tile = 32 // itemsize
    c_pad = ((C + sub_tile - 1) // sub_tile) * sub_tile
    tile_bytes = c_pad * tn * itemsize
    spec = pl.BlockSpec((None, C, tn), lambda j, b: (b, 0, j))
    out = pl.pallas_call(
        functools.partial(_ln_lane_kernel, eps=float(eps), inv_c=inv_c),
        out_shape=jax.ShapeDtypeStruct((B, C, HW), x.dtype),
        grid_spec=pltpu.PrefetchScalarGridSpec(
            num_scalar_prefetch=0,
            grid=(n_tiles, B),
            in_specs=[spec,
                      pl.BlockSpec((C, 1), lambda j, b: (0, 0)),
                      pl.BlockSpec((C, 1), lambda j, b: (0, 0))],
            out_specs=spec,
        ),
        compiler_params=pltpu.CompilerParams(
            dimension_semantics=("parallel", "parallel"),
            vmem_limit_bytes=_vmem_limit_bytes(tile_bytes, 2),
        ),
        cost_estimate=cost,
    )(x3, w1.reshape(C, 1), b1.reshape(C, 1))
    return out.reshape(B, C, H, W)


def residual_layernorm2d_pallas(inp, dx, beta, weight, bias, eps=1e-6):
    """Fused y = inp + dx*beta (per channel) and LN(y). Returns (y, LN(y))."""
    B, C, H, W = inp.shape
    HW = H * W
    itemsize = jnp.dtype(inp.dtype).itemsize
    if HW % _LANE != 0:
        # TODO(synk): residual add stays un-fused on the odd-spatial fallback path.
        y = inp + dx * beta.reshape(1, C, 1, 1)
        return y, layernorm2d_pallas(y, weight, bias, eps)

    w1 = weight.reshape(C).astype(jnp.float32)
    b1 = bias.reshape(C).astype(jnp.float32)
    beta1 = beta.reshape(C).astype(jnp.float32)
    n_sub = HW // _LANE
    ts = _choose_sub_tile(n_sub, C, itemsize)
    n_tiles = pl.cdiv(n_sub, ts)
    inp4 = inp.reshape(B, C, n_sub, _LANE)
    dx4 = dx.reshape(B, C, n_sub, _LANE)
    tile_bytes = C * ts * _LANE * itemsize
    spec = pl.BlockSpec((None, C, ts, _LANE), lambda j, b: (b, 0, j, 0))
    smem = pl.BlockSpec(memory_space=pltpu.MemorySpace.SMEM)
    n_elems = B * C * HW
    cost = pl.CostEstimate(flops=12 * n_elems, transcendentals=B * HW,
                           bytes_accessed=4 * n_elems * itemsize)
    y4, o4 = pl.pallas_call(
        functools.partial(_res_ln_spatial_kernel, eps=float(eps), inv_c=1.0 / C),
        out_shape=(jax.ShapeDtypeStruct((B, C, n_sub, _LANE), inp.dtype),
                   jax.ShapeDtypeStruct((B, C, n_sub, _LANE), inp.dtype)),
        grid_spec=pltpu.PrefetchScalarGridSpec(
            num_scalar_prefetch=0,
            grid=(n_tiles, B),
            in_specs=[spec, spec, smem, smem, smem],
            out_specs=[spec, spec],
        ),
        compiler_params=pltpu.CompilerParams(
            dimension_semantics=("parallel", "parallel"),
            vmem_limit_bytes=_vmem_limit_bytes(tile_bytes, 4),
        ),
        cost_estimate=cost,
    )(inp4, dx4, w1, b1, beta1)
    return y4.reshape(B, C, H, W), o4.reshape(B, C, H, W)


def layernorm2d_ref(x, weight, bias, eps=1e-6):
    """Pure-jnp reference (mirrors LayerNormFunction.forward)."""
    mu = jnp.mean(x, axis=1, keepdims=True)
    var = jnp.mean((x - mu) ** 2, axis=1, keepdims=True)
    y = (x - mu) / jnp.sqrt(var + eps)
    return weight.reshape(1, -1, 1, 1) * y + bias.reshape(1, -1, 1, 1)


# ----------------------------------------------------------------------------
# CHIMB / CHIMBSR forward (convolutions left to XLA)
# ----------------------------------------------------------------------------
# TODO(synk): the spatial conv stack (1x1 / depthwise 3x3 / LKA 5x5 + dilated
# 7x7) and the LN+1x1-conv fusions have no clean Pallas win at these shapes;
# convs run via lax.conv_general_dilated.
def _conv2d(x, w, b=None, stride=1, padding=0, dilation=1, groups=1):
    y = jax.lax.conv_general_dilated(
        x, w,
        window_strides=(stride, stride),
        padding=[(padding, padding), (padding, padding)],
        rhs_dilation=(dilation, dilation),
        dimension_numbers=('NCHW', 'OIHW', 'NCHW'),
        feature_group_count=groups)
    if b is not None:
        y = y + b.reshape(1, -1, 1, 1)
    return y


def _init_conv(key, out_c, in_c_per_group, k):
    kw, kb = jax.random.split(key)
    scale = 1.0 / math.sqrt(in_c_per_group * k * k)
    w = scale * jax.random.normal(kw, (out_c, in_c_per_group, k, k), jnp.float32)
    b = scale * jax.random.normal(kb, (out_c,), jnp.float32)
    return w, b


class CHIMBPallas:
    def __init__(self, c, key, dw_expand=2, ffn_expand=2):
        self.c = c
        self.dw = c * dw_expand
        self.ffn = ffn_expand * c
        self.eps = 1e-6
        ks = jax.random.split(key, 16)
        self.conv1 = _init_conv(ks[0], self.dw, c, 1)
        self.conv2 = _init_conv(ks[1], self.dw, 1, 3)              # depthwise 3x3
        self.conv3 = _init_conv(ks[2], c, self.dw // 2, 1)
        self.lka_conv0 = _init_conv(ks[3], self.dw // 2, 1, 5)     # depthwise 5x5
        self.lka_spatial = _init_conv(ks[4], self.dw // 2, 1, 7)   # depthwise 7x7, dil 3
        self.lka_conv1 = _init_conv(ks[5], self.dw // 2, self.dw // 2, 1)
        self.sca2 = _init_conv(ks[6], self.dw // 2, self.dw // 2, 1)
        self.conv4 = _init_conv(ks[7], self.ffn, c, 1)
        self.conv5 = _init_conv(ks[8], self.ffn, 1, 3)             # depthwise 3x3
        self.conv6 = _init_conv(ks[9], c, self.ffn // 2, 1)
        # LayerNorm affine params (torch default ones/zeros; perturbed so the
        # affine path is exercised).
        self.norm1_w = jnp.ones((c,), jnp.float32) + 0.1 * jax.random.normal(ks[10], (c,))
        self.norm1_b = 0.1 * jax.random.normal(ks[11], (c,))
        self.norm2_w = jnp.ones((c,), jnp.float32) + 0.1 * jax.random.normal(ks[12], (c,))
        self.norm2_b = 0.1 * jax.random.normal(ks[13], (c,))
        # beta/gamma are zeros in torch (block reduces to identity); randomized
        # so the whole block contributes to the output in this test.
        self.beta = 0.1 * jax.random.normal(ks[14], (1, c, 1, 1))
        self.gamma = 0.1 * jax.random.normal(ks[15], (1, c, 1, 1))

    def _lka(self, x):
        g = self.dw // 2
        attn = _conv2d(x, *self.lka_conv0, padding=2, groups=g)
        attn = _conv2d(attn, *self.lka_spatial, padding=9, dilation=3, groups=g)
        attn = _conv2d(attn, *self.lka_conv1)
        return x * attn

    def __call__(self, inp, use_pallas=True):
        if use_pallas:
            x = layernorm2d_pallas(inp, self.norm1_w, self.norm1_b, self.eps)
        else:
            x = layernorm2d_ref(inp, self.norm1_w, self.norm1_b, self.eps)
        x = _conv2d(x, *self.conv1)
        x = _conv2d(x, *self.conv2, padding=1, groups=self.dw)
        x1, x2 = jnp.split(x, 2, axis=1)
        x = x1 * x2                                            # SimpleGate
        pooled = jnp.mean(x, axis=(2, 3), keepdims=True)       # AdaptiveAvgPool2d(1)
        sca2 = _conv2d(pooled, *self.sca2)
        x = sca2 * x + self._lka(x)
        x = _conv2d(x, *self.conv3)
        if use_pallas:
            # fused: y = inp + x*beta  and  x = LN2(y) in one HBM pass
            y, x = residual_layernorm2d_pallas(
                inp, x, self.beta, self.norm2_w, self.norm2_b, self.eps)
        else:
            y = inp + x * self.beta
            x = layernorm2d_ref(y, self.norm2_w, self.norm2_b, self.eps)
        x = _conv2d(x, *self.conv4)
        x = _conv2d(x, *self.conv5, padding=1, groups=self.ffn)
        x1, x2 = jnp.split(x, 2, axis=1)
        x = jax.nn.gelu(x1, approximate=False) * x2
        x = _conv2d(x, *self.conv6)
        return y + x * self.gamma


class CHIMBSRPallas:
    def __init__(self, c, key, fusion=False):
        self.blk = CHIMBPallas(c, key)
        # TODO(synk): CVIM fusion branch (cross-view attention + Dynamic_conv2d)
        # not implemented; CHIMBSR defaults to fusion=False.
        if fusion:
            raise NotImplementedError("CVIM fusion branch not implemented")
        self.fusion = None

    def __call__(self, *feats, use_pallas=True):
        # Stack stereo views along batch -> one pass through the block (halves
        # the number of LN kernel launches); all ops are batch-independent.
        if len(feats) > 1 and all(f.shape == feats[0].shape for f in feats):
            stacked = jnp.concatenate(feats, axis=0)
            out = self.blk(stacked, use_pallas=use_pallas)
            b = feats[0].shape[0]
            return tuple(out[i * b:(i + 1) * b] for i in range(len(feats)))
        return tuple(self.blk(x, use_pallas=use_pallas) for x in feats)


# ----------------------------------------------------------------------------
if __name__ == "__main__":
    key = jax.random.PRNGKey(0)
    k_in1, k_in2, k_mod, k_ln = jax.random.split(key, 4)

    B, C, H, W = 2, 4, 16, 16
    x_l = jax.random.normal(k_in1, (B, C, H, W), jnp.float32)
    x_r = jax.random.normal(k_in2, (B, C, H, W), jnp.float32)

    w = jnp.ones((C,), jnp.float32) + 0.1 * jax.random.normal(
        jax.random.fold_in(k_ln, 0), (C,), jnp.float32)
    b = 0.1 * jax.random.normal(jax.random.fold_in(k_ln, 1), (C,), jnp.float32)

    # 1) standalone LayerNorm2d, main (sublane,lane) layout (HW % 128 == 0)
    y_pl = jax.block_until_ready(layernorm2d_pallas(x_l, w, b, 1e-6))
    y_rf = layernorm2d_ref(x_l, w, b, 1e-6)
    assert y_pl.shape == (B, C, H, W)
    assert jnp.allclose(y_pl, y_rf, atol=1e-4, rtol=1e-4)

    # 2) standalone LayerNorm2d, fallback lane layout (HW % 128 != 0)
    x_s = jax.random.normal(jax.random.fold_in(k_ln, 2), (B, C, 12, 12), jnp.float32)
    y_pl2 = jax.block_until_ready(layernorm2d_pallas(x_s, w, b, 1e-6))
    assert jnp.allclose(y_pl2, layernorm2d_ref(x_s, w, b, 1e-6), atol=1e-4, rtol=1e-4)

    # 3) fused residual-add + LayerNorm2d
    dx = jax.random.normal(jax.random.fold_in(k_ln, 3), (B, C, H, W), jnp.float32)
    beta = 0.1 * jax.random.normal(jax.random.fold_in(k_ln, 4), (1, C, 1, 1), jnp.float32)
    y_f, ln_f = residual_layernorm2d_pallas(x_l, dx, beta, w, b, 1e-6)
    y_f = jax.block_until_ready(y_f)
    ln_f = jax.block_until_ready(ln_f)
    y_ref = x_l + dx * beta
    assert jnp.allclose(y_f, y_ref, atol=1e-4, rtol=1e-4)
    assert jnp.allclose(ln_f, layernorm2d_ref(y_ref, w, b, 1e-6), atol=1e-4, rtol=1e-4)

    # 4) full CHIMBSR forward on the stereo pair, Pallas-LN path vs jnp-LN path
    model = CHIMBSRPallas(C, k_mod, fusion=False)
    out_l, out_r = model(x_l, x_r)                       # Pallas kernels inside
    out_l = jax.block_until_ready(out_l)
    out_r = jax.block_until_ready(out_r)
    ref_l, ref_r = model(x_l, x_r, use_pallas=False)
    assert out_l.shape == (B, C, H, W) and out_r.shape == (B, C, H, W)
    assert jnp.allclose(out_l, ref_l, atol=1e-4, rtol=1e-4)
    assert jnp.allclose(out_r, ref_r, atol=1e-4, rtol=1e-4)

    print("KERNEL_OK")
</pallas_src>

<mosaic_0001>
module attributes {stable_mosaic.version = 11 : i64} {
  func.func @_ln_spatial_kernel(%arg0: i32, %arg1: i32, %arg2: memref<1x4x2x128xf32, #tpu.memory_space<vmem>>, %arg3: memref<4xf32, #tpu.memory_space<smem>>, %arg4: memref<4xf32, #tpu.memory_space<smem>>, %arg5: memref<1x4x2x128xf32, #tpu.memory_space<vmem>>) attributes {dimension_semantics = [#tpu.dimension_semantics<parallel>, #tpu.dimension_semantics<parallel>], iteration_bounds = array<i64: 1, 2>, scalar_prefetch = 0 : i64, scratch_operands = 0 : i64, tpu.core_type = #tpu.core_type<tc>, window_params = [{transform_indices = @transform_0, window_bounds = array<i64: 1, 4, 2, 128>}, {transform_indices = @transform_1, window_bounds = array<i64: 4>}, {transform_indices = @transform_2, window_bounds = array<i64: 4>}, {transform_indices = @transform_3, window_bounds = array<i64: 1, 4, 2, 128>}]} {
    %c0 = arith.constant 0 : index
    %c0_0 = arith.constant 0 : index
    %c0_1 = arith.constant 0 : index
    %c0_2 = arith.constant 0 : index
    %0 = vector.load %arg2[%c0, %c0_0, %c0_1, %c0_2] : memref<1x4x2x128xf32, #tpu.memory_space<vmem>>, vector<1x4x2x128xf32>
    %1 = vector.shape_cast %0 : vector<1x4x2x128xf32> to vector<4x2x128xf32>
    %2 = vector.extract_strided_slice %1 {offsets = [0, 0, 0], sizes = [1, 2, 128], strides = [1, 1, 1]} : vector<4x2x128xf32> to vector<1x2x128xf32>
    %3 = vector.shape_cast %2 : vector<1x2x128xf32> to vector<2x128xf32>
    %4 = vector.extract_strided_slice %1 {offsets = [1, 0, 0], sizes = [1, 2, 128], strides = [1, 1, 1]} : vector<4x2x128xf32> to vector<1x2x128xf32>
    %5 = vector.shape_cast %4 : vector<1x2x128xf32> to vector<2x128xf32>
    %6 = arith.addf %3, %5 : vector<2x128xf32>
    %7 = vector.extract_strided_slice %1 {offsets = [2, 0, 0], sizes = [1, 2, 128], strides = [1, 1, 1]} : vector<4x2x128xf32> to vector<1x2x128xf32>
    %8 = vector.shape_cast %7 : vector<1x2x128xf32> to vector<2x128xf32>
    %9 = arith.addf %6, %8 : vector<2x128xf32>
    %10 = vector.extract_strided_slice %1 {offsets = [3, 0, 0], sizes = [1, 2, 128], strides = [1, 1, 1]} : vector<4x2x128xf32> to vector<1x2x128xf32>
    %11 = vector.shape_cast %10 : vector<1x2x128xf32> to vector<2x128xf32>
    %12 = arith.addf %9, %11 : vector<2x128xf32>
    %cst = arith.constant 2.500000e-01 : f32
    %13 = vector.broadcast %cst : f32 to vector<2x128xf32>
    %14 = arith.mulf %12, %13 : vector<2x128xf32>
    %15 = vector.extract_strided_slice %1 {offsets = [0, 0, 0], sizes = [1, 2, 128], strides = [1, 1, 1]} : vector<4x2x128xf32> to vector<1x2x128xf32>
    %16 = vector.shape_cast %15 : vector<1x2x128xf32> to vector<2x128xf32>
    %17 = arith.subf %16, %14 : vector<2x128xf32>
    %18 = vector.extract_strided_slice %1 {offsets = [1, 0, 0], sizes = [1, 2, 128], strides = [1, 1, 1]} : vector<4x2x128xf32> to vector<1x2x128xf32>
    %19 = vector.shape_cast %18 : vector<1x2x128xf32> to vector<2x128xf32>
    %20 = arith.subf %19, %14 : vector<2x128xf32>
    %21 = vector.extract_strided_slice %1 {offsets = [2, 0, 0], sizes = [1, 2, 128], strides = [1, 1, 1]} : vector<4x2x128xf32> to vector<1x2x128xf32>
    %22 = vector.shape_cast %21 : vector<1x2x128xf32> to vector<2x128xf32>
    %23 = arith.subf %22, %14 : vector<2x128xf32>
    %24 = vector.extract_strided_slice %1 {offsets = [3, 0, 0], sizes = [1, 2, 128], strides = [1, 1, 1]} : vector<4x2x128xf32> to vector<1x2x128xf32>
    %25 = vector.shape_cast %24 : vector<1x2x128xf32> to vector<2x128xf32>
    %26 = arith.subf %25, %14 : vector<2x128xf32>
    %27 = arith.mulf %17, %17 : vector<2x128xf32>
    %28 = arith.mulf %20, %20 : vector<2x128xf32>
    %29 = arith.addf %27, %28 : vector<2x128xf32>
    %30 = arith.mulf %23, %23 : vector<2x128xf32>
    %31 = arith.addf %29, %30 : vector<2x128xf32>
    %32 = arith.mulf %26, %26 : vector<2x128xf32>
    %33 = arith.addf %31, %32 : vector<2x128xf32>
    %cst_3 = arith.constant 2.500000e-01 : f32
    %34 = vector.broadcast %cst_3 : f32 to vector<2x128xf32>
    %35 = arith.mulf %33, %34 : vector<2x128xf32>
    %cst_4 = arith.constant 9.99999997E-7 : f32
    %36 = vector.broadcast %cst_4 : f32 to vector<2x128xf32>
    %37 = arith.addf %35, %36 : vector<2x128xf32>
    %38 = math.rsqrt %37 : vector<2x128xf32>
    %39 = arith.mulf %17, %38 : vector<2x128xf32>
    %c0_5 = arith.constant 0 : index
    %40 = memref.load %arg3[%c0_5] : memref<4xf32, #tpu.memory_space<smem>>
    %41 = vector.broadcast %40 : f32 to vector<2x128xf32>
    %42 = arith.mulf %39, %41 : vector<2x128xf32>
    %c0_6 = arith.constant 0 : index
    %43 = memref.load %arg4[%c0_6] : memref<4xf32, #tpu.memory_space<smem>>
    %44 = vector.broadcast %43 : f32 to vector<2x128xf32>
    %45 = arith.addf %42, %44 : vector<2x128xf32>
    %c0_7 = arith.constant 0 : index
    %c0_8 = arith.constant 0 : index
    %c0_9 = arith.constant 0 : index
    %c0_10 = arith.constant 0 : index
    %46 = vector.load %arg5[%c0_7, %c0_8, %c0_9, %c0_10] : memref<1x4x2x128xf32, #tpu.memory_space<vmem>>, vector<1x1x2x128xf32>
    %47 = vector.shape_cast %46 : vector<1x1x2x128xf32> to vector<2x128xf32>
    %48 = vector.shape_cast %45 : vector<2x128xf32> to vector<1x1x2x128xf32>
    tpu.vector_store %arg5[%c0_7, %c0_8, %c0_9, %c0_10], %48 {strides = array<i32>} : memref<1x4x2x128xf32, #tpu.memory_space<vmem>>, vector<1x1x2x128xf32>,
    %49 = arith.mulf %20, %38 : vector<2x128xf32>
    %c1 = arith.constant 1 : index
    %50 = memref.load %arg3[%c1] : memref<4xf32, #tpu.memory_space<smem>>
    %51 = vector.broadcast %50 : f32 to vector<2x128xf32>
    %52 = arith.mulf %49, %51 : vector<2x128xf32>
    %c1_11 = arith.constant 1 : index
    %53 = memref.load %arg4[%c1_11] : memref<4xf32, #tpu.memory_space<smem>>
    %54 = vector.broadcast %53 : f32 to vector<2x128xf32>
    %55 = arith.addf %52, %54 : vector<2x128xf32>
    %c0_12 = arith.constant 0 : index
    %c1_13 = arith.constant 1 : index
    %c0_14 = arith.constant 0 : index
    %c0_15 = arith.constant 0 : index
    %56 = vector.load %arg5[%c0_12, %c1_13, %c0_14, %c0_15] : memref<1x4x2x128xf32, #tpu.memory_space<vmem>>, vector<1x1x2x128xf32>
    %57 = vector.shape_cast %56 : vector<1x1x2x128xf32> to vector<2x128xf32>
    %58 = vector.shape_cast %55 : vector<2x128xf32> to vector<1x1x2x128xf32>
    tpu.vector_store %arg5[%c0_12, %c1_13, %c0_14, %c0_15], %58 {strides = array<i32>} : memref<1x4x2x128xf32, #tpu.memory_space<vmem>>, vector<1x1x2x128xf32>,
    %59 = arith.mulf %23, %38 : vector<2x128xf32>
    %c2 = arith.constant 2 : index
    %60 = memref.load %arg3[%c2] : memref<4xf32, #tpu.memory_space<smem>>
    %61 = vector.broadcast %60 : f32 to vector<2x128xf32>
    %62 = arith.mulf %59, %61 : vector<2x128xf32>
    %c2_16 = arith.constant 2 : index
    %63 = memref.load %arg4[%c2_16] : memref<4xf32, #tpu.memory_space<smem>>
    %64 = vector.broadcast %63 : f32 to vector<2x128xf32>
    %65 = arith.addf %62, %64 : vector<2x128xf32>
    %c0_17 = arith.constant 0 : index
    %c2_18 = arith.constant 2 : index
    %c0_19 = arith.constant 0 : index
    %c0_20 = arith.constant 0 : index
    %66 = vector.load %arg5[%c0_17, %c2_18, %c0_19, %c0_20] : memref<1x4x2x128xf32, #tpu.memory_space<vmem>>, vector<1x1x2x128xf32>
    %67 = vector.shape_cast %66 : vector<1x1x2x128xf32> to vector<2x128xf32>
    %68 = vector.shape_cast %65 : vector<2x128xf32> to vector<1x1x2x128xf32>
    tpu.vector_store %arg5[%c0_17, %c2_18, %c0_19, %c0_20], %68 {strides = array<i32>} : memref<1x4x2x128xf32, #tpu.memory_space<vmem>>, vector<1x1x2x128xf32>,
    %69 = arith.mulf %26, %38 : vector<2x128xf32>
    %c3 = arith.constant 3 : index
    %70 = memref.load %arg3[%c3] : memref<4xf32, #tpu.memory_space<smem>>
    %71 = vector.broadcast %70 : f32 to vector<2x128xf32>
    %72 = arith.mulf %69, %71 : vector<2x128xf32>
    %c3_21 = arith.constant 3 : index
    %73 = memref.load %arg4[%c3_21] : memref<4xf32, #tpu.memory_space<smem>>
    %74 = vector.broadcast %73 : f32 to vector<2x128xf32>
    %75 = arith.addf %72, %74 : vector<2x128xf32>
    %c0_22 = arith.constant 0 : index
    %c3_23 = arith.constant 3 : index
    %c0_24 = arith.constant 0 : index
    %c0_25 = arith.constant 0 : index
    %76 = vector.load %arg5[%c0_22, %c3_23, %c0_24, %c0_25] : memref<1x4x2x128xf32, #tpu.memory_space<vmem>>, vector<1x1x2x128xf32>
    %77 = vector.shape_cast %76 : vector<1x1x2x128xf32> to vector<2x128xf32>
    %78 = vector.shape_cast %75 : vector<2x128xf32> to vector<1x1x2x128xf32>
    tpu.vector_store %arg5[%c0_22, %c3_23, %c0_24, %c0_25], %78 {strides = array<i32>} : memref<1x4x2x128xf32, #tpu.memory_space<vmem>>, vector<1x1x2x128xf32>,
    return
  }
  func.func @transform_0(%arg0: i32, %arg1: i32) -> (i32, i32, i32, i32) {
    %c0_i32 = arith.constant 0 : i32
    %c0_i32_0 = arith.constant 0 : i32
    %c0_i32_1 = arith.constant 0 : i32
    return %arg1, %c0_i32, %arg0, %c0_i32_0 : i32, i32, i32, i32
  }
  func.func @transform_1(%arg0: i32, %arg1: i32) -> i32 {
    %c0_i32 = arith.constant 0 : i32
    %c0_i32_0 = arith.constant 0 : i32
    return %c0_i32 : i32
  }
  func.func @transform_2(%arg0: i32, %arg1: i32) -> i32 {
    %c0_i32 = arith.constant 0 : i32
    %c0_i32_0 = arith.constant 0 : i32
    return %c0_i32 : i32
  }
  func.func @transform_3(%arg0: i32, %arg1: i32) -> (i32, i32, i32, i32) {
    %c0_i32 = arith.constant 0 : i32
    %c0_i32_0 = arith.constant 0 : i32
    %c0_i32_1 = arith.constant 0 : i32
    return %arg1, %c0_i32, %arg0, %c0_i32_0 : i32, i32, i32, i32
  }
}

</mosaic_0001>

<llo_original>
// kernel: tpu_custom_call.1
$region0: #{tpu_custom_call.1}
  #allocation0 [shape = 'u32[]', space=smem, size = 0x4, offset = 0x4, fixed_abs, tag = 'smem constant byte address 0x4 - core index']
  #allocation1 [shape = 'u32[144,128]{1,0:T(1,128)}', space=vmem, size = 0x12000, scoped, tag = 'internal scratch']
  %s0 = inlined_call_operand.hbm [shape: f32[2,4,2,128], index: 0, kind: input, shape index: {}]
  %s1 = inlined_call_operand.vmem [shape: f32[4], index: 1, kind: input, shape index: {}]
  %s2 = inlined_call_operand.vmem [shape: f32[4], index: 2, kind: input, shape index: {}]
  %s3 = inlined_call_operand.hbm [shape: f32[2,4,2,128], index: 3, kind: output, shape index: {}]
  %s4 = sld [smem:[#allocation0]]
  $region57: #{tpu_custom_call.1} parent=0
    _
  %s6 = ssub.s32 1, %s4
  %s7 = scalar_select 0, %s6, %s4
  $region1: #{tpu_custom_call.1} parent=0
    #allocation2 [shape = 'u8[8192]{0}', space=vmem, size = 0x2000, scoped, tag = 'input window, operand 0']
    #allocation3 [shape = 's32[2]{0}', space=sflag, size = 0x8, scoped, tag = 'scoped memory for tpu_custom_call.1']
    #allocation4 [shape = 's32[2]{0}', space=sflag, size = 0x8, scoped, tag = 'scoped memory for tpu_custom_call.1']
    #allocation5 [shape = 's32[2]{0}', space=sflag, size = 0x8, scoped, tag = 'scoped memory for tpu_custom_call.1']
    #allocation6 [shape = 'u8[512]{0}', space=smem, size = 0x200, scoped, tag = 'input window, operand 1, single buffered']
    #allocation7 [shape = 'u8[512]{0}', space=smem, size = 0x200, scoped, tag = 'input window, operand 2, single buffered']
    #allocation8 [shape = 's32[1]{0}', space=sflag, size = 0x4, scoped, tag = 'scoped memory for tpu_custom_call.1']
    #allocation9 [shape = 'u8[8192]{0}', space=vmem, size = 0x2000, scoped, tag = 'output window, operand 0']
    %8 = vsyncpa [#allocation3], 0
    %s9 = scalar_lea.sflag [#allocation3], 1
    %10 = vsyncpa %s9, 0
    %11 = vsyncpa [#allocation5], 0
    %12 = vsyncpa [#allocation8], 0
    %13 = vsyncpa [#allocation4], 0
    %s14 = scalar_lea.sflag [#allocation4], 1
    %15 = vsyncpa %s14, 0
    loop: start=0, step=1, limit=4
    $region2: #{tpu_custom_call.1} parent=1 // loop_pre_header
      _
    $region3: #{tpu_custom_call.1} parent=1 // loop_header
      %s17 = sphi 0, %s21
      %p18 = scmp.ge.s32.totalorder %s17, 4
      %s24 = sphi 0, %s36
      %s25 = sphi 0, %s32
      %s26 = sphi 0, %s24
      %s27 = sphi 0, %s25
      %s28 = sphi 0, %s26
      %s29 = sphi 0, %s27
      %s41 = sphi 0, %s43
      %s44 = sphi 0, %s41
      %s45 = sphi 0, %s44
      %s61 = sphi 0, %s45
      %s65 = sphi 0, %s65
      %s67 = sphi 0, %s65
      %s68 = sphi 0, %s67
      %s82 = sphi 0, %s68
      %s86 = sphi 0, %s86
      %s88 = sphi 0, %s86
      %s89 = sphi 0, %s88
      %s103 = sphi 0, %s89
      %s111 = sphi 0, %s113
      %s114 = sphi 0, %s111
      %s115 = sphi 0, %s114
      %s131 = sphi 0, %s115
    $region4: #{tpu_custom_call.1} parent=1 // loop_header_branch
      %20 = sbr.rel (%p18) target = $region8
    $region5: #{tpu_custom_call.1} parent=1 // loop_body
      %s22 = ssub.s32 %s17, 1
      %s23 = ssub.s32 %s17, 2
      %s30 = sadd.s32 1, %s25
      %p31 = scmp.ge.s32.totalorder %s30, 2
      %s32 = scalar_select %p31, 0, %s30
      %s33 = sadd.s32 1, %s24
      %s34 = scalar_select %p31, %s33, %s24
      %p35 = scmp.ge.s32.totalorder %s34, 1
      %s36 = scalar_select %p35, 0, %s34
      %s37 = ssub.s32 %s25, %s32
      %s38 = ssub.s32 %s24, %s36
      %s39 = sor.u32 %s37, %s38
      %p40 = scmp.eq.s32.totalorder %s39, 0
      %s42 = sadd.s32 %s41, 1
      %s43 = scalar_select %p40, %s41, %s42
      %p46 = pneg %p40
      %p47 = scmp.eq.s32.totalorder %s17, 1
      %p48 = por %p46, %p47
      %p49 = scmp.ne.s32.totalorder %s41, %s44
      %p50 = scmp.eq.s32.totalorder %s17, 0
      %p51 = por %p49, %p50
      %p52 = scmp.ne.s32.totalorder %s41, %s44
      %p53 = scmp.eq.s32.totalorder %s22, 1
      %p54 = por %p52, %p53
      %p55 = scmp.ne.s32.totalorder %s44, %s45
      %p56 = scmp.eq.s32.totalorder %s22, 0
      %p57 = por %p55, %p56
      %p58 = scmp.ne.s32.totalorder %s44, %s45
      %p59 = scmp.eq.s32.totalorder %s23, 1
      %p60 = por %p58, %p59
      %p62 = scmp.ne.s32.totalorder %s45, %s61
      %p63 = scmp.eq.s32.totalorder %s23, 0
      %p64 = por %p62, %p63
      %s66 = sadd.s32 %s65, 1
      %p69 = scmp.eq.s32.totalorder %s17, 1
      %p70 = scmp.ne.s32.totalorder %s65, %s67
      %p71 = scmp.eq.s32.totalorder %s17, 0
      %p72 = por %p70, %p71
      %p73 = scmp.ne.s32.totalorder %s65, %s67
      %p74 = scmp.eq.s32.totalorder %s22, 1
      %p75 = por %p73, %p74
      %p76 = scmp.ne.s32.totalorder %s67, %s68
      %p77 = scmp.eq.s32.totalorder %s22, 0
      %p78 = por %p76, %p77
      %p79 = scmp.ne.s32.totalorder %s67, %s68
      %p80 = scmp.eq.s32.totalorder %s23, 1
      %p81 = por %p79, %p80
      %p83 = scmp.ne.s32.totalorder %s68, %s82
      %p84 = scmp.eq.s32.totalorder %s23, 0
      %p85 = por %p83, %p84
      %s87 = sadd.s32 %s86, 1
      %p90 = scmp.eq.s32.totalorder %s17, 1
      %p91 = scmp.ne.s32.totalorder %s86, %s88
      %p92 = scmp.eq.s32.totalorder %s17, 0
      %p93 = por %p91, %p92
      %p94 = scmp.ne.s32.totalorder %s86, %s88
      %p95 = scmp.eq.s32.totalorder %s22, 1
      %p96 = por %p94, %p95
      %p97 = scmp.ne.s32.totalorder %s88, %s89
      %p98 = scmp.eq.s32.totalorder %s22, 0
      %p99 = por %p97, %p98
      %p100 = scmp.ne.s32.totalorder %s88, %s89
      %p101 = scmp.eq.s32.totalorder %s23, 1
      %p102 = por %p100, %p101
      %p104 = scmp.ne.s32.totalorder %s89, %s103
      %p105 = scmp.eq.s32.totalorder %s23, 0
      %p106 = por %p104, %p105
      %s107 = ssub.s32 %s25, %s32
      %s108 = ssub.s32 %s24, %s36
      %s109 = sor.u32 %s107, %s108
      %p110 = scmp.eq.s32.totalorder %s109, 0
      %s112 = sadd.s32 %s111, 1
      %s113 = scalar_select %p110, %s111, %s112
      %p116 = pneg %p110
      %p117 = scmp.eq.s32.totalorder %s17, 1
      %p118 = por %p116, %p117
      %p119 = scmp.ne.s32.totalorder %s111, %s114
      %p120 = scmp.eq.s32.totalorder %s17, 0
      %p121 = por %p119, %p120
      %p122 = scmp.ne.s32.totalorder %s111, %s114
      %p123 = scmp.eq.s32.totalorder %s22, 1
      %p124 = por %p122, %p123
      %p125 = scmp.ne.s32.totalorder %s114, %s115
      %p126 = scmp.eq.s32.totalorder %s22, 0
      %p127 = por %p125, %p126
      %p128 = scmp.ne.s32.totalorder %s114, %s115
      %p129 = scmp.eq.s32.totalorder %s23, 1
      %p130 = por %p128, %p129
      %p132 = scmp.ne.s32.totalorder %s115, %s131
      %p133 = scmp.eq.s32.totalorder %s23, 0
      %p134 = por %p132, %p133
      %p135 = scmp.le.s32.totalorder 1, %s17
      %p136 = scmp.lt.s32.totalorder %s17, 3
      %p137 = pnand %p135, %p136
      %p138 = pneg %p137
      // Predicated region
      $region9: #{tpu_custom_call.1} parent=5 // pred_check
        _
      $region10: #{tpu_custom_call.1} parent=5 // pred_check_branch
        %140 = sbr.rel (%p137) target = $region12
      $region11: #{tpu_custom_call.1} parent=5 // pred_region
        %s141 = ssub.s32 %s17, 1
        // Predicated region
        $region13: #{tpu_custom_call.1} parent=11 // pred_check
          %p142 = pneg %p78
        $region14: #{tpu_custom_call.1} parent=11 // pred_check_branch
          %144 = sbr.rel (%p142) target = $region16
        $region15: #{tpu_custom_call.1} parent=11 // pred_region
          %s146 = ssub.s32 16, 16
          %147 = vsyncadd [#allocation5], %s146
          %s149 = sshll.u32 %s1, 4
          %s150 = int_to_ptr.vmem [resolvable:$true] %s149
          %152 = dma.vmem_to_smem %s150, 16, [#allocation6], [#allocation5]
        $region16: #{tpu_custom_call.1} parent=11 // pred_fallthru
          _
        // Predicated region
        $region17: #{tpu_custom_call.1} parent=11 // pred_check
          %p153 = pneg %p99
        $region18: #{tpu_custom_call.1} parent=11 // pred_check_branch
          %155 = sbr.rel (%p153) target = $region20
        $region19: #{tpu_custom_call.1} parent=11 // pred_region
          %s157 = ssub.s32 16, 16
          %158 = vsyncadd [#allocation8], %s157
          %s160 = sshll.u32 %s2, 4
          %s161 = int_to_ptr.vmem [resolvable:$true] %s160
          %163 = dma.vmem_to_smem %s161, 16, [#allocation7], [#allocation8]
        $region20: #{tpu_custom_call.1} parent=11 // pred_fallthru
          _
      $region12: #{tpu_custom_call.1} parent=5 // pred_fallthru
        _
      %p164 = scmp.lt.s32.totalorder %s17, 2
      // Predicated region
      $region21: #{tpu_custom_call.1} parent=5 // pred_check
        %p165 = pneg %p164
      $region22: #{tpu_custom_call.1} parent=5 // pred_check_branch
        %167 = sbr.rel (%p165) target = $region24
      $region23: #{tpu_custom_call.1} parent=5 // pred_region
        // Predicated region
        $region25: #{tpu_custom_call.1} parent=23 // pred_check
          %p168 = pneg %p51
        $region26: #{tpu_custom_call.1} parent=23 // pred_check_branch
          %170 = sbr.rel (%p168) target = $region28
        $region27: #{tpu_custom_call.1} parent=23 // pred_region
          %s171 = sand.u32 %s41, 1
          %s172 = scalar_lea.sflag [#allocation3], %s171
          %s173 = sand.u32 %s41, 1
          %s174 = smul.addr %s173, 8
          %s175 = scalar_lea.vmem [#allocation2], %s174
          %s177 = ssub.s32 128, 128
          %178 = vsyncadd %s172, %s177
          %s179 = smul.addr %s25, 4
          %s180 = sadd.s32 %s24, %s179
          %s181 = smul.addr %s180, 32
          %s182 = scalar_lea.hbm %s0, %s181
          %s183 = sshll.u32 %s175, 4
          %s184 = int_to_ptr.vmem [resolvable:$true] %s183
          %189 = dma.hbm_to_vmem [thread:$0]  %s182, 128, %s184, %s172, 32, 32, 2
        $region28: #{tpu_custom_call.1} parent=23 // pred_fallthru
          _
      $region24: #{tpu_custom_call.1} parent=5 // pred_fallthru
        _
      %p190 = scmp.le.s32.totalorder 1, %s17
      %p191 = scmp.lt.s32.totalorder %s17, 3
      %p192 = pnand %p190, %p191
      %p193 = pneg %p192
      // Predicated region
      $region29: #{tpu_custom_call.1} parent=5 // pred_check
        _
      $region30: #{tpu_custom_call.1} parent=5 // pred_check_branch
        %195 = sbr.rel (%p192) target = $region32
      $region31: #{tpu_custom_call.1} parent=5 // pred_region
        %s196 = ssub.s32 %s17, 1
        %s197 = sand.u32 %s44, 1
        %s198 = scalar_lea.sflag [#allocation3], %s197
        %s199 = sand.u32 %s44, 1
        %s200 = smul.addr %s199, 8
        %s201 = scalar_lea.vmem [#allocation2], %s200
        // Predicated region
        $region33: #{tpu_custom_call.1} parent=31 // pred_check
          %p202 = pneg %p57
        $region34: #{tpu_custom_call.1} parent=31 // pred_check_branch
          %204 = sbr.rel (%p202) target = $region36
        $region35: #{tpu_custom_call.1} parent=31 // pred_region
          %205 = dma.done %s198, 128
        $region36: #{tpu_custom_call.1} parent=31 // pred_fallthru
          _
        // Predicated region
        $region37: #{tpu_custom_call.1} parent=31 // pred_check
          %p206 = pneg %p78
        $region38: #{tpu_custom_call.1} parent=31 // pred_check_branch
          %208 = sbr.rel (%p206) target = $region40
        $region39: #{tpu_custom_call.1} parent=31 // pred_region
          %209 = dma.done [#allocation5], 16
        $region40: #{tpu_custom_call.1} parent=31 // pred_fallthru
          _
        // Predicated region
        $region41: #{tpu_custom_call.1} parent=31 // pred_check
          %p210 = pneg %p99
        $region42: #{tpu_custom_call.1} parent=31 // pred_check_branch
          %212 = sbr.rel (%p210) target = $region44
        $region43: #{tpu_custom_call.1} parent=31 // pred_region
          %213 = dma.done [#allocation8], 16
        $region44: #{tpu_custom_call.1} parent=31 // pred_fallthru
          _
        %214 = sfence
        %s215 = sand.u32 %s44, 1
        %s216 = scalar_lea.sflag [#allocation3], %s215
        %s217 = sand.u32 %s44, 1
        %s218 = smul.addr %s217, 8
        %s219 = scalar_lea.vmem [#allocation2], %s218
        %p220 = pneg %p57
        %p221 = pneg %p54
        %p222 = pneg %p78
        %p223 = pneg %p75
        %p224 = pneg %p99
        %p225 = pneg %p96
        %p226 = pneg %p127
        %p227 = pneg %p124
        %s228 = sand.u32 %s114, 1
        %s229 = scalar_lea.sflag [#allocation4], %s228
        %s230 = sand.u32 %s114, 1
        %s231 = smul.addr %s230, 8
        %s232 = scalar_lea.vmem [#allocation9], %s231
        %v233 = vld [vmem:[%s201] sm:$0x3]
        %v234 = vld [vmem:[%s201 + $0x2] sm:$0x3]
        %v235 = vld [vmem:[%s201 + $0x4] sm:$0x3]
        %v236 = vld [vmem:[%s201 + $0x6] sm:$0x3]
        %v237 = vadd.f32 %v233, %v234
        %v238 = vadd.f32 %v237, %v235
        %v239 = vadd.f32 %v238, %v236
        %v240 = vmul.f32 %v239, 0.25
        %v241 = vsub.f32 %v233, %v240
        %v242 = vsub.f32 %v234, %v240
        %v243 = vsub.f32 %v235, %v240
        %v244 = vsub.f32 %v236, %v240
        %v245 = vmul.f32 %v241, %v241
        %v246 = vmul.f32 %v242, %v242
        %v247 = vadd.f32 %v245, %v246
        %v248 = vmul.f32 %v243, %v243
        %v249 = vadd.f32 %v247, %v248
        %v250 = vmul.f32 %v244, %v244
        %v251 = vadd.f32 %v249, %v250
        %v252 = vmul.f32 %v251, 0.25
        %v253 = vadd.f32 %v252, 1e-06
        %v254 = vrsqrt.pop %v253
        %v255 = vmul.f32 %v241, %v254
        %s256 = sld [smem:[#allocation6]]
        %v257 = vstv %s256
        %v258 = vmul.f32 %v255, %v257
        %s259 = sld [smem:[#allocation7]]
        %v260 = vstv %s259
        %v261 = vadd.f32 %v258, %v260
        %262 = vst [vmem:[%s232] sm:$0x3] %v261
        %v263 = vmul.f32 %v242, %v254
        %s264 = sld [smem:[#allocation6 + $0x1]]
        %v265 = vstv %s264
        %v266 = vmul.f32 %v263, %v265
        %s267 = sld [smem:[#allocation7 + $0x1]]
        %v268 = vstv %s267
        %v269 = vadd.f32 %v266, %v268
        %s270 = scalar_lea.vmem %s232, 2 [#allocation9]
        %271 = vst [vmem:[%s270] sm:$0x3] %v269
        %v272 = vmul.f32 %v243, %v254
        %s273 = sld [smem:[#allocation6 + $0x2]]
        %v274 = vstv %s273
        %v275 = vmul.f32 %v272, %v274
        %s276 = sld [smem:[#allocation7 + $0x2]]
        %v277 = vstv %s276
        %v278 = vadd.f32 %v275, %v277
        %s279 = scalar_lea.vmem %s232, 4 [#allocation9]
        %280 = vst [vmem:[%s279] sm:$0x3] %v278
        %v281 = vmul.f32 %v244, %v254
        %s282 = sld [smem:[#allocation6 + $0x3]]
        %v283 = vstv %s282
        %v284 = vmul.f32 %v281, %v283
        %s285 = sld [smem:[#allocation7 + $0x3]]
        %v286 = vstv %s285
        %v287 = vadd.f32 %v284, %v286
        %s288 = scalar_lea.vmem %s232, 6 [#allocation9]
        %289 = vst [vmem:[%s288] sm:$0x3] %v287
        %s290 = sand.u32 %s114, 1
        %s291 = scalar_lea.sflag [#allocation4], %s290
        %s292 = sand.u32 %s114, 1
        %s293 = smul.addr %s292, 8
        %s294 = scalar_lea.vmem [#allocation9], %s293
        // Predicated region
        $region45: #{tpu_custom_call.1} parent=31 // pred_check
          %p295 = pneg %p124
        $region46: #{tpu_custom_call.1} parent=31 // pred_check_branch
          %297 = sbr.rel (%p295) target = $region48
        $region47: #{tpu_custom_call.1} parent=31 // pred_region
          %s299 = ssub.s32 128, 128
          %300 = vsyncadd %s291, %s299
          %s301 = smul.addr %s27, 4
          %s302 = sadd.s32 %s26, %s301
          %s303 = smul.addr %s302, 32
          %s304 = scalar_lea.hbm %s3, %s303
          %s305 = sshll.u32 %s294, 4
          %s306 = int_to_ptr.vmem [resolvable:$true] %s305
          %311 = dma.vmem_to_hbm [thread:$0]  %s306, 128, %s304, %s291, 32, 32, 2
        $region48: #{tpu_custom_call.1} parent=31 // pred_fallthru
          _
      $region32: #{tpu_custom_call.1} parent=5 // pred_fallthru
        _
      %p312 = scmp.le.s32.totalorder 2, %s17
      // Predicated region
      $region49: #{tpu_custom_call.1} parent=5 // pred_check
        %p313 = pneg %p312
      $region50: #{tpu_custom_call.1} parent=5 // pred_check_branch
        %315 = sbr.rel (%p313) target = $region52
      $region51: #{tpu_custom_call.1} parent=5 // pred_region
        %s316 = ssub.s32 %s17, 2
        // Predicated region
        $region53: #{tpu_custom_call.1} parent=51 // pred_check
          %p317 = pneg %p130
        $region54: #{tpu_custom_call.1} parent=51 // pred_check_branch
          %319 = sbr.rel (%p317) target = $region56
        $region55: #{tpu_custom_call.1} parent=51 // pred_region
          %s320 = sand.u32 %s115, 1
          %s321 = scalar_lea.sflag [#allocation4], %s320
          %s322 = sand.u32 %s115, 1
          %s323 = smul.addr %s322, 8
          %s324 = scalar_lea.vmem [#allocation9], %s323
          %325 = dma.done %s321, 128
        $region56: #{tpu_custom_call.1} parent=51 // pred_fallthru
          _
      $region52: #{tpu_custom_call.1} parent=5 // pred_fallthru
        _
    $region6: #{tpu_custom_call.1} parent=1 // loop_footer
      %s21 = sadd.s32 1, %s17
    $region7: #{tpu_custom_call.1} parent=1 // loop_footer_branch
      %16 = sbr.rel target = $region3
    $region8: #{tpu_custom_call.1} parent=1 // loop_exit
      _
    %326 = vsyncpa [#allocation3], 1
    %s327 = scalar_lea.sflag [#allocation3], 1
    %328 = vsyncpa %s327, 1
    %329 = vsyncpa [#allocation4], 1
    %s330 = scalar_lea.sflag [#allocation4], 1
    %331 = vsyncpa %s330, 1
    %332 = vsyncpa [#allocation5], 1
    %s333 = scalar_lea.sflag [#allocation5], 1
    %334 = vsyncpa %s333, 1
    %335 = vsyncpa [#allocation8], 1

</llo_original>
